<compile_context>
chip_gen: v7x
topology: tpu7x:2x2x1
jax: 0.10.0
libtpu: 0.0.40
codegen_flags: <defaults>
</compile_context>

<pallas_src>
import jax
import jax.numpy as jnp
from jax.experimental import pallas as pl
from jax.experimental.pallas import tpu as pltpu


_LANE = 1024                 # lane-dense last dim (multiple of 128 -> unmasked stores)
_TARGET_BLOCK_BYTES = 4 << 20   # ~4 MiB per array per block
_MIN_PALLAS_ROWS = 128       # below this, plain-JAX fallback (dispatch overhead dominates)
_MIN_GRID_STEPS = 4          # keep both v7x TensorCores fed via the "parallel" axis
_VMEM_LIMIT_BYTES = 40 << 20  # 3 arrays x 2 buffers x 4 MiB = 24 MiB (+ headroom); v5e default is 16 MiB


def _mix_kernel(m_ref, f1_ref, f2_ref, o_ref):
    # m_ref: (1,) f32 mix factor (already sigmoided) in SMEM via scalar prefetch.
    m = m_ref[0]
    f1 = f1_ref[...]
    f2 = f2_ref[...]
    # f1*m + f2*(1-m) == f2 + m*(f1 - f2)   (one fewer VALU op per vreg)
    o_ref[...] = (f2 + m * (f1 - f2)).astype(o_ref.dtype)


def _blend(f1, f2, m):
    """Plain-JAX blend in the same FMA form, cast back to the feature dtype."""
    return (f2 + m * (f1 - f2)).astype(f1.dtype)


def mix_forward(fea1, fea2, w):
    """Pallas implementation of Mix.forward.

    fea1, fea2: float arrays of identical shape (e.g. NCHW).
    w: float array of shape (1,) -- the learned mixing parameter.
    """
    assert fea1.shape == fea2.shape
    assert fea1.dtype == fea2.dtype
    orig_shape = fea1.shape
    total = fea1.size
    dtype = fea1.dtype
    itemsize = jnp.dtype(dtype).itemsize

    # Mix factor: sigmoid of the learned scalar, computed once (f32).
    mix = jax.nn.sigmoid(w.astype(jnp.float32)).reshape(1)

    rows = total // _LANE
    if rows < _MIN_PALLAS_ROWS:
        # Tiny feature maps: pallas_call dispatch + grid-step overhead dwarfs the
        # copy; let XLA fuse the elementwise blend instead.
        return _blend(fea1, fea2, mix[0])

    bulk = rows * _LANE
    if bulk == total:
        f1b = fea1.reshape(rows, _LANE)
        f2b = fea2.reshape(rows, _LANE)
        f1_flat = f2_flat = None
    else:
        f1_flat = fea1.reshape(-1)
        f2_flat = fea2.reshape(-1)
        f1b = f1_flat[:bulk].reshape(rows, _LANE)
        f2b = f2_flat[:bulk].reshape(rows, _LANE)

    # Block rows: ~4 MiB per array per block (dtype-aware), but never so large
    # that the grid has fewer than _MIN_GRID_STEPS steps.
    target_rows = max(8, _TARGET_BLOCK_BYTES // (_LANE * itemsize))
    step_rows = -(-rows // _MIN_GRID_STEPS)        # cdiv(rows, min_steps)
    step_rows = -(-step_rows // 8) * 8             # round up to a sublane multiple
    blk_rows = max(8, min(target_rows, step_rows))
    grid = (pl.cdiv(rows, blk_rows),)

    cost = pl.CostEstimate(
        flops=3 * bulk,                      # sub + mul + add per element
        transcendentals=0,
        bytes_accessed=3 * bulk * itemsize,  # 2 reads + 1 write
    )

    bulk_out = pl.pallas_call(
        _mix_kernel,
        out_shape=jax.ShapeDtypeStruct((rows, _LANE), dtype),
        grid_spec=pltpu.PrefetchScalarGridSpec(
            num_scalar_prefetch=1,            # mix factor -> SMEM
            grid=grid,
            in_specs=[
                pl.BlockSpec((blk_rows, _LANE), lambda i, m_s: (i, 0)),
                pl.BlockSpec((blk_rows, _LANE), lambda i, m_s: (i, 0)),
            ],
            out_specs=pl.BlockSpec((blk_rows, _LANE), lambda i, m_s: (i, 0)),
        ),
        compiler_params=pltpu.CompilerParams(
            dimension_semantics=("parallel",),    # shard blocks across TCs on v7x
            vmem_limit_bytes=_VMEM_LIMIT_BYTES,
        ),
        cost_estimate=cost,
    )(mix, f1b, f2b)

    out_flat = bulk_out.reshape(-1)
    if bulk != total:
        # <1024-element tail handled in plain JAX (no pad/slice of the bulk).
        tail_out = _blend(f1_flat[bulk:], f2_flat[bulk:], mix[0])
        out_flat = jnp.concatenate([out_flat, tail_out])
    return out_flat.reshape(orig_shape)


if __name__ == "__main__":
    key = jax.random.PRNGKey(0)
    k1, k2, k3, k4, k5, k6 = jax.random.split(key, 6)

    # Deterministic parameter init matching nn.Parameter(FloatTensor([m])), m=-0.8
    w = jnp.array([-0.8], dtype=jnp.float32)
    m = jax.nn.sigmoid(w[0])

    # 1) Small NCHW feature map -> plain-JAX fallback path.
    a1 = jax.random.normal(k1, (2, 4, 16, 16), dtype=jnp.float32)
    a2 = jax.random.normal(k2, (2, 4, 16, 16), dtype=jnp.float32)
    out_a = jax.block_until_ready(mix_forward(a1, a2, w))
    ref_a = a1 * m + a2 * (1.0 - m)
    assert out_a.shape == a1.shape
    assert jnp.allclose(out_a, ref_a, atol=1e-6), "mismatch (fallback path)"

    # 2) Larger lane-divisible map -> Pallas path (>=4-step parallel grid).
    b1 = jax.random.normal(k3, (2, 8, 128, 128), dtype=jnp.float32)
    b2 = jax.random.normal(k4, (2, 8, 128, 128), dtype=jnp.float32)
    out_b = jax.block_until_ready(mix_forward(b1, b2, w))
    ref_b = b1 * m + b2 * (1.0 - m)
    assert out_b.shape == b1.shape
    assert jnp.allclose(out_b, ref_b, atol=1e-6), "mismatch (Pallas path)"

    # 3) Odd-sized map -> Pallas bulk + plain-JAX tail (no pad/slice copies).
    c1 = jax.random.normal(k5, (2, 5, 131, 117), dtype=jnp.float32)
    c2 = jax.random.normal(k6, (2, 5, 131, 117), dtype=jnp.float32)
    out_c = jax.block_until_ready(mix_forward(c1, c2, w))
    ref_c = c1 * m + c2 * (1.0 - m)
    assert out_c.shape == c1.shape
    assert jnp.allclose(out_c, ref_c, atol=1e-6), "mismatch (bulk+tail path)"

    print("KERNEL_OK")
</pallas_src>

<mosaic_0001>
module attributes {stable_mosaic.version = 11 : i64} {
  func.func @_mix_kernel(%arg0: i32, %arg1: memref<1xf32, #tpu.memory_space<smem>>, %arg2: memref<64x1024xf32, #tpu.memory_space<vmem>>, %arg3: memref<64x1024xf32, #tpu.memory_space<vmem>>, %arg4: memref<64x1024xf32, #tpu.memory_space<vmem>>) attributes {dimension_semantics = [#tpu.dimension_semantics<parallel>], iteration_bounds = array<i64: 4>, scalar_prefetch = 1 : i64, scratch_operands = 0 : i64, tpu.core_type = #tpu.core_type<tc>, window_params = [{transform_indices = @transform_0, window_bounds = array<i64: 64, 1024>}, {transform_indices = @transform_1, window_bounds = array<i64: 64, 1024>}, {transform_indices = @transform_2, window_bounds = array<i64: 64, 1024>}]} {
    %c0 = arith.constant 0 : index
    %0 = memref.load %arg1[%c0] : memref<1xf32, #tpu.memory_space<smem>>
    %c0_0 = arith.constant 0 : index
    %c0_1 = arith.constant 0 : index
    %1 = vector.load %arg2[%c0_0, %c0_1] : memref<64x1024xf32, #tpu.memory_space<vmem>>, vector<64x1024xf32>
    %c0_2 = arith.constant 0 : index
    %c0_3 = arith.constant 0 : index
    %2 = vector.load %arg3[%c0_2, %c0_3] : memref<64x1024xf32, #tpu.memory_space<vmem>>, vector<64x1024xf32>
    %3 = arith.subf %1, %2 : vector<64x1024xf32>
    %4 = vector.broadcast %0 : f32 to vector<64x1024xf32>
    %5 = arith.mulf %4, %3 : vector<64x1024xf32>
    %6 = arith.addf %2, %5 : vector<64x1024xf32>
    %c0_4 = arith.constant 0 : index
    %c0_5 = arith.constant 0 : index
    %7 = vector.load %arg4[%c0_4, %c0_5] : memref<64x1024xf32, #tpu.memory_space<vmem>>, vector<64x1024xf32>
    tpu.vector_store %arg4[%c0_4, %c0_5], %6 {strides = array<i32>} : memref<64x1024xf32, #tpu.memory_space<vmem>>, vector<64x1024xf32>,
    return
  }
  func.func @transform_0(%arg0: i32, %arg1: memref<1xf32, #tpu.memory_space<smem>>) -> (i32, i32) {
    %c0_i32 = arith.constant 0 : i32
    %c0_i32_0 = arith.constant 0 : i32
    return %arg0, %c0_i32 : i32, i32
  }
  func.func @transform_1(%arg0: i32, %arg1: memref<1xf32, #tpu.memory_space<smem>>) -> (i32, i32) {
    %c0_i32 = arith.constant 0 : i32
    %c0_i32_0 = arith.constant 0 : i32
    return %arg0, %c0_i32 : i32, i32
  }
  func.func @transform_2(%arg0: i32, %arg1: memref<1xf32, #tpu.memory_space<smem>>) -> (i32, i32) {
    %c0_i32 = arith.constant 0 : i32
    %c0_i32_0 = arith.constant 0 : i32
    return %arg0, %c0_i32 : i32, i32
  }
}

</mosaic_0001>

<llo_original>
// kernel: tpu_custom_call.1
$region0: #{tpu_custom_call.1}
  #allocation0 [shape = 'u32[]', space=smem, size = 0x4, offset = 0x4, fixed_abs, tag = 'smem constant byte address 0x4 - core index']
  #allocation1 [shape = 'u32[144,128]{1,0:T(1,128)}', space=vmem, size = 0x12000, scoped, tag = 'internal scratch']
  #allocation2 [shape = 's32[1]{0}', space=sflag, size = 0x4, scoped, tag = 'scoped memory for tpu_custom_call.1']
  #allocation3 [shape = 'f32[1]{0:T(128)S(6)}', space=smem, size = 0x200, scoped, tag = 'prefetched SMEM operand 0']
  %s0 = inlined_call_operand.<no memory space> [shape: f32[1], index: 0, kind: input, shape index: {}]
  %s1 = inlined_call_operand.hbm [shape: f32[256,1024], index: 1, kind: input, shape index: {}]
  %s2 = inlined_call_operand.hbm [shape: f32[256,1024], index: 2, kind: input, shape index: {}]
  %s3 = inlined_call_operand.hbm [shape: f32[256,1024], index: 3, kind: output, shape index: {}]
  %s4 = sld [smem:[#allocation0]]
  $region49: #{tpu_custom_call.1} parent=0
    _
  %s6 = ssub.s32 1, %s4
  %s7 = scalar_select 0, %s6, %s4
  %8 = sst [smem:[#allocation3]] %s0
  $region1: #{tpu_custom_call.1} parent=0
    #allocation4 [shape = 'u8[524288]{0}', space=vmem, size = 0x80000, scoped, tag = 'input window, operand 1']
    #allocation5 [shape = 's32[2]{0}', space=sflag, size = 0x8, scoped, tag = 'scoped memory for tpu_custom_call.1']
    #allocation6 [shape = 's32[2]{0}', space=sflag, size = 0x8, scoped, tag = 'scoped memory for tpu_custom_call.1']
    #allocation7 [shape = 'u8[524288]{0}', space=vmem, size = 0x80000, scoped, tag = 'input window, operand 2']
    #allocation8 [shape = 's32[2]{0}', space=sflag, size = 0x8, scoped, tag = 'scoped memory for tpu_custom_call.1']
    #allocation9 [shape = 'u8[524288]{0}', space=vmem, size = 0x80000, scoped, tag = 'output window, operand 0']
    %9 = vsyncpa [#allocation5], 0
    %s10 = scalar_lea.sflag [#allocation5], 1
    %11 = vsyncpa %s10, 0
    %12 = vsyncpa [#allocation8], 0
    %s13 = scalar_lea.sflag [#allocation8], 1
    %14 = vsyncpa %s13, 0
    %15 = vsyncpa [#allocation6], 0
    %s16 = scalar_lea.sflag [#allocation6], 1
    %17 = vsyncpa %s16, 0
    loop: start=0, step=1, limit=6
    $region2: #{tpu_custom_call.1} parent=1 // loop_pre_header
      _
    $region3: #{tpu_custom_call.1} parent=1 // loop_header
      %s19 = sphi 0, %s23
      %p20 = scmp.ge.s32.totalorder %s19, 6
      %s29 = sphi 0, %s31
      %s32 = sphi 0, %s29
      %s33 = sphi 0, %s32
      %s49 = sphi 0, %s33
      %s55 = sphi 0, %s57
      %s58 = sphi 0, %s55
      %s59 = sphi 0, %s58
      %s75 = sphi 0, %s59
      %s81 = sphi 0, %s83
      %s84 = sphi 0, %s81
      %s85 = sphi 0, %s84
      %s101 = sphi 0, %s85
    $region4: #{tpu_custom_call.1} parent=1 // loop_header_branch
      %22 = sbr.rel (%p20) target = $region8
    $region5: #{tpu_custom_call.1} parent=1 // loop_body
      %s24 = ssub.s32 %s19, 1
      %s25 = ssub.s32 %s19, 2
      %s26 = sadd.s32 %s19, 1
      %s27 = ssub.s32 %s19, %s26
      %p28 = scmp.eq.s32.totalorder %s27, 0
      %s30 = sadd.s32 %s29, 1
      %s31 = scalar_select %p28, %s29, %s30
      %p34 = pneg %p28
      %p35 = scmp.eq.s32.totalorder %s19, 3
      %p36 = por %p34, %p35
      %p37 = scmp.ne.s32.totalorder %s29, %s32
      %p38 = scmp.eq.s32.totalorder %s19, 0
      %p39 = por %p37, %p38
      %p40 = scmp.ne.s32.totalorder %s29, %s32
      %p41 = scmp.eq.s32.totalorder %s24, 3
      %p42 = por %p40, %p41
      %p43 = scmp.ne.s32.totalorder %s32, %s33
      %p44 = scmp.eq.s32.totalorder %s24, 0
      %p45 = por %p43, %p44
      %p46 = scmp.ne.s32.totalorder %s32, %s33
      %p47 = scmp.eq.s32.totalorder %s25, 3
      %p48 = por %p46, %p47
      %p50 = scmp.ne.s32.totalorder %s33, %s49
      %p51 = scmp.eq.s32.totalorder %s25, 0
      %p52 = por %p50, %p51
      %s53 = ssub.s32 %s19, %s26
      %p54 = scmp.eq.s32.totalorder %s53, 0
      %s56 = sadd.s32 %s55, 1
      %s57 = scalar_select %p54, %s55, %s56
      %p60 = pneg %p54
      %p61 = scmp.eq.s32.totalorder %s19, 3
      %p62 = por %p60, %p61
      %p63 = scmp.ne.s32.totalorder %s55, %s58
      %p64 = scmp.eq.s32.totalorder %s19, 0
      %p65 = por %p63, %p64
      %p66 = scmp.ne.s32.totalorder %s55, %s58
      %p67 = scmp.eq.s32.totalorder %s24, 3
      %p68 = por %p66, %p67
      %p69 = scmp.ne.s32.totalorder %s58, %s59
      %p70 = scmp.eq.s32.totalorder %s24, 0
      %p71 = por %p69, %p70
      %p72 = scmp.ne.s32.totalorder %s58, %s59
      %p73 = scmp.eq.s32.totalorder %s25, 3
      %p74 = por %p72, %p73
      %p76 = scmp.ne.s32.totalorder %s59, %s75
      %p77 = scmp.eq.s32.totalorder %s25, 0
      %p78 = por %p76, %p77
      %s79 = ssub.s32 %s19, %s26
      %p80 = scmp.eq.s32.totalorder %s79, 0
      %s82 = sadd.s32 %s81, 1
      %s83 = scalar_select %p80, %s81, %s82
      %p86 = pneg %p80
      %p87 = scmp.eq.s32.totalorder %s19, 3
      %p88 = por %p86, %p87
      %p89 = scmp.ne.s32.totalorder %s81, %s84
      %p90 = scmp.eq.s32.totalorder %s19, 0
      %p91 = por %p89, %p90
      %p92 = scmp.ne.s32.totalorder %s81, %s84
      %p93 = scmp.eq.s32.totalorder %s24, 3
      %p94 = por %p92, %p93
      %p95 = scmp.ne.s32.totalorder %s84, %s85
      %p96 = scmp.eq.s32.totalorder %s24, 0
      %p97 = por %p95, %p96
      %p98 = scmp.ne.s32.totalorder %s84, %s85
      %p99 = scmp.eq.s32.totalorder %s25, 3
      %p100 = por %p98, %p99
      %p102 = scmp.ne.s32.totalorder %s85, %s101
      %p103 = scmp.eq.s32.totalorder %s25, 0
      %p104 = por %p102, %p103
      %p105 = scmp.le.s32.totalorder 1, %s19
      %p106 = scmp.lt.s32.totalorder %s19, 5
      %p107 = pnand %p105, %p106
      %p108 = pneg %p107
      // Predicated region
      $region9: #{tpu_custom_call.1} parent=5 // pred_check
        _
      $region10: #{tpu_custom_call.1} parent=5 // pred_check_branch
        %110 = sbr.rel (%p107) target = $region12
      $region11: #{tpu_custom_call.1} parent=5 // pred_region
        %s111 = ssub.s32 %s19, 1
      $region12: #{tpu_custom_call.1} parent=5 // pred_fallthru
        _
      %p112 = scmp.lt.s32.totalorder %s19, 4
      // Predicated region
      $region13: #{tpu_custom_call.1} parent=5 // pred_check
        %p113 = pneg %p112
      $region14: #{tpu_custom_call.1} parent=5 // pred_check_branch
        %115 = sbr.rel (%p113) target = $region16
      $region15: #{tpu_custom_call.1} parent=5 // pred_region
        // Predicated region
        $region17: #{tpu_custom_call.1} parent=15 // pred_check
          %p116 = pneg %p39
        $region18: #{tpu_custom_call.1} parent=15 // pred_check_branch
          %118 = sbr.rel (%p116) target = $region20
        $region19: #{tpu_custom_call.1} parent=15 // pred_region
          %s119 = sand.u32 %s29, 1
          %s120 = scalar_lea.sflag [#allocation5], %s119
          %s121 = sand.u32 %s29, 1
          %s122 = smul.addr %s121, 512
          %s123 = scalar_lea.vmem [#allocation4], %s122
          %s124 = smul.u32 8, %s19
          %s126 = ssub.s32 8192, 8192
          %127 = vsyncadd %s120, %s126
          %s128 = smul.addr %s124, 8
          %s129 = smul.addr %s128, 128
          %s130 = scalar_lea.hbm %s1, %s129
          %s131 = sshll.u32 %s123, 4
          %s132 = int_to_ptr.vmem [resolvable:$true] %s131
          %137 = dma.hbm_to_vmem [thread:$0]  %s130, 8192, %s132, %s120, 1024, 1024, 64
        $region20: #{tpu_custom_call.1} parent=15 // pred_fallthru
          _
        // Predicated region
        $region21: #{tpu_custom_call.1} parent=15 // pred_check
          %p138 = pneg %p65
        $region22: #{tpu_custom_call.1} parent=15 // pred_check_branch
          %140 = sbr.rel (%p138) target = $region24
        $region23: #{tpu_custom_call.1} parent=15 // pred_region
          %s141 = sand.u32 %s55, 1
          %s142 = scalar_lea.sflag [#allocation8], %s141
          %s143 = sand.u32 %s55, 1
          %s144 = smul.addr %s143, 512
          %s145 = scalar_lea.vmem [#allocation7], %s144
          %s146 = smul.u32 8, %s19
          %s148 = ssub.s32 8192, 8192
          %149 = vsyncadd %s142, %s148
          %s150 = smul.addr %s146, 8
          %s151 = smul.addr %s150, 128
          %s152 = scalar_lea.hbm %s2, %s151
          %s153 = sshll.u32 %s145, 4
          %s154 = int_to_ptr.vmem [resolvable:$true] %s153
          %159 = dma.hbm_to_vmem [thread:$0]  %s152, 8192, %s154, %s142, 1024, 1024, 64
        $region24: #{tpu_custom_call.1} parent=15 // pred_fallthru
          _
      $region16: #{tpu_custom_call.1} parent=5 // pred_fallthru
        _
      %p160 = scmp.le.s32.totalorder 1, %s19
      %p161 = scmp.lt.s32.totalorder %s19, 5
      %p162 = pnand %p160, %p161
      %p163 = pneg %p162
      // Predicated region
      $region25: #{tpu_custom_call.1} parent=5 // pred_check
        _
      $region26: #{tpu_custom_call.1} parent=5 // pred_check_branch
        %165 = sbr.rel (%p162) target = $region28
      $region27: #{tpu_custom_call.1} parent=5 // pred_region
        %s166 = ssub.s32 %s19, 1
        %s167 = sand.u32 %s32, 1
        %s168 = scalar_lea.sflag [#allocation5], %s167
        %s169 = sand.u32 %s32, 1
        %s170 = smul.addr %s169, 512
        %s171 = scalar_lea.vmem [#allocation4], %s170
        // Predicated region
        $region29: #{tpu_custom_call.1} parent=27 // pred_check
          %p172 = pneg %p45
        $region30: #{tpu_custom_call.1} parent=27 // pred_check_branch
          %174 = sbr.rel (%p172) target = $region32
        $region31: #{tpu_custom_call.1} parent=27 // pred_region
          %175 = dma.done %s168, 8192
        $region32: #{tpu_custom_call.1} parent=27 // pred_fallthru
          _
        %s176 = sand.u32 %s58, 1
        %s177 = scalar_lea.sflag [#allocation8], %s176
        %s178 = sand.u32 %s58, 1
        %s179 = smul.addr %s178, 512
        %s180 = scalar_lea.vmem [#allocation7], %s179
        // Predicated region
        $region33: #{tpu_custom_call.1} parent=27 // pred_check
          %p181 = pneg %p71
        $region34: #{tpu_custom_call.1} parent=27 // pred_check_branch
          %183 = sbr.rel (%p181) target = $region36
        $region35: #{tpu_custom_call.1} parent=27 // pred_region
          %184 = dma.done %s177, 8192
        $region36: #{tpu_custom_call.1} parent=27 // pred_fallthru
          _
        %s185 = sand.u32 %s32, 1
        %s186 = scalar_lea.sflag [#allocation5], %s185
        %s187 = sand.u32 %s32, 1
        %s188 = smul.addr %s187, 512
        %s189 = scalar_lea.vmem [#allocation4], %s188
        %p190 = pneg %p45
        %p191 = pneg %p42
        %s192 = sand.u32 %s58, 1
        %s193 = scalar_lea.sflag [#allocation8], %s192
        %s194 = sand.u32 %s58, 1
        %s195 = smul.addr %s194, 512
        %s196 = scalar_lea.vmem [#allocation7], %s195
        %p197 = pneg %p71
        %p198 = pneg %p68
        %p199 = pneg %p97
        %p200 = pneg %p94
        %s201 = sand.u32 %s84, 1
        %s202 = scalar_lea.sflag [#allocation6], %s201
        %s203 = sand.u32 %s84, 1
        %s204 = smul.addr %s203, 512
        %s205 = scalar_lea.vmem [#allocation9], %s204
        %s206 = smul.u32 8, %s24
        %s207 = smul.u32 8, %s24
        %s208 = smul.u32 8, %s24
        %s209 = sld [smem:[#allocation3]]
        %v210 = vld [vmem:[%s171] sm:$0xff]
        %v211 = vld [vmem:[%s171 + $0x8] sm:$0xff]
        %v212 = vld [vmem:[%s171 + $0x10] sm:$0xff]
        %v213 = vld [vmem:[%s171 + $0x18] sm:$0xff]
        %v214 = vld [vmem:[%s171 + $0x20] sm:$0xff]
        %v215 = vld [vmem:[%s171 + $0x28] sm:$0xff]
        %v216 = vld [vmem:[%s171 + $0x30] sm:$0xff]
        %v217 = vld [vmem:[%s171 + $0x38] sm:$0xff]
        %v218 = vld [vmem:[%s171 + $0x40] sm:$0xff]
        %v219 = vld [vmem:[%s171 + $0x48] sm:$0xff]
        %v220 = vld [vmem:[%s171 + $0x50] sm:$0xff]
        %v221 = vld [vmem:[%s171 + $0x58] sm:$0xff]
        %v222 = vld [vmem:[%s171 + $0x60] sm:$0xff]
        %v223 = vld [vmem:[%s171 + $0x68] sm:$0xff]
        %v224 = vld [vmem:[%s171 + $0x70] sm:$0xff]
        %v225 = vld [vmem:[%s171 + $0x78] sm:$0xff]
        %v226 = vld [vmem:[%s171 + $0x80] sm:$0xff]
        %v227 = vld [vmem:[%s171 + $0x88] sm:$0xff]
        %v228 = vld [vmem:[%s171 + $0x90] sm:$0xff]
        %v229 = vld [vmem:[%s171 + $0x98] sm:$0xff]
        %v230 = vld [vmem:[%s171 + $0xa0] sm:$0xff]
        %v231 = vld [vmem:[%s171 + $0xa8] sm:$0xff]
        %v232 = vld [vmem:[%s171 + $0xb0] sm:$0xff]
        %v233 = vld [vmem:[%s171 + $0xb8] sm:$0xff]
        %v234 = vld [vmem:[%s171 + $0xc0] sm:$0xff]
        %v235 = vld [vmem:[%s171 + $0xc8] sm:$0xff]
        %v236 = vld [vmem:[%s171 + $0xd0] sm:$0xff]
        %v237 = vld [vmem:[%s171 + $0xd8] sm:$0xff]
        %v238 = vld [vmem:[%s171 + $0xe0] sm:$0xff]
        %v239 = vld [vmem:[%s171 + $0xe8] sm:$0xff]
        %v240 = vld [vmem:[%s171 + $0xf0] sm:$0xff]
        %v241 = vld [vmem:[%s171 + $0xf8] sm:$0xff]
        %v242 = vld [vmem:[%s171 + $0x100] sm:$0xff]
        %v243 = vld [vmem:[%s171 + $0x108] sm:$0xff]
        %v244 = vld [vmem:[%s171 + $0x110] sm:$0xff]
        %v245 = vld [vmem:[%s171 + $0x118] sm:$0xff]
        %v246 = vld [vmem:[%s171 + $0x120] sm:$0xff]
        %v247 = vld [vmem:[%s171 + $0x128] sm:$0xff]
        %v248 = vld [vmem:[%s171 + $0x130] sm:$0xff]
        %v249 = vld [vmem:[%s171 + $0x138] sm:$0xff]
        %v250 = vld [vmem:[%s171 + $0x140] sm:$0xff]
        %v251 = vld [vmem:[%s171 + $0x148] sm:$0xff]
        %v252 = vld [vmem:[%s171 + $0x150] sm:$0xff]
        %v253 = vld [vmem:[%s171 + $0x158] sm:$0xff]
        %v254 = vld [vmem:[%s171 + $0x160] sm:$0xff]
        %v255 = vld [vmem:[%s171 + $0x168] sm:$0xff]
        %v256 = vld [vmem:[%s171 + $0x170] sm:$0xff]
        %v257 = vld [vmem:[%s171 + $0x178] sm:$0xff]
        %v258 = vld [vmem:[%s171 + $0x180] sm:$0xff]
        %v259 = vld [vmem:[%s171 + $0x188] sm:$0xff]
        %v260 = vld [vmem:[%s171 + $0x190] sm:$0xff]
        %v261 = vld [vmem:[%s171 + $0x198] sm:$0xff]
        %v262 = vld [vmem:[%s171 + $0x1a0] sm:$0xff]
        %v263 = vld [vmem:[%s171 + $0x1a8] sm:$0xff]
        %v264 = vld [vmem:[%s171 + $0x1b0] sm:$0xff]
        %v265 = vld [vmem:[%s171 + $0x1b8] sm:$0xff]
        %v266 = vld [vmem:[%s171 + $0x1c0] sm:$0xff]
        %v267 = vld [vmem:[%s171 + $0x1c8] sm:$0xff]
        %v268 = vld [vmem:[%s171 + $0x1d0] sm:$0xff]
        %v269 = vld [vmem:[%s171 + $0x1d8] sm:$0xff]
        %v270 = vld [vmem:[%s171 + $0x1e0] sm:$0xff]
        %v271 = vld [vmem:[%s171 + $0x1e8] sm:$0xff]
        %v272 = vld [vmem:[%s171 + $0x1f0] sm:$0xff]
        %v273 = vld [vmem:[%s171 + $0x1f8] sm:$0xff]
        %v274 = vld [vmem:[%s180] sm:$0xff]
        %v275 = vld [vmem:[%s180 + $0x8] sm:$0xff]
        %v276 = vld [vmem:[%s180 + $0x10] sm:$0xff]
        %v277 = vld [vmem:[%s180 + $0x18] sm:$0xff]
        %v278 = vld [vmem:[%s180 + $0x20] sm:$0xff]
        %v279 = vld [vmem:[%s180 + $0x28] sm:$0xff]
        %v280 = vld [vmem:[%s180 + $0x30] sm:$0xff]
        %v281 = vld [vmem:[%s180 + $0x38] sm:$0xff]
        %v282 = vld [vmem:[%s180 + $0x40] sm:$0xff]
        %v283 = vld [vmem:[%s180 + $0x48] sm:$0xff]
        %v284 = vld [vmem:[%s180 + $0x50] sm:$0xff]
        %v285 = vld [vmem:[%s180 + $0x58] sm:$0xff]
        %v286 = vld [vmem:[%s180 + $0x60] sm:$0xff]
        %v287 = vld [vmem:[%s180 + $0x68] sm:$0xff]
        %v288 = vld [vmem:[%s180 + $0x70] sm:$0xff]
        %v289 = vld [vmem:[%s180 + $0x78] sm:$0xff]
        %v290 = vld [vmem:[%s180 + $0x80] sm:$0xff]
        %v291 = vld [vmem:[%s180 + $0x88] sm:$0xff]
        %v292 = vld [vmem:[%s180 + $0x90] sm:$0xff]
        %v293 = vld [vmem:[%s180 + $0x98] sm:$0xff]
        %v294 = vld [vmem:[%s180 + $0xa0] sm:$0xff]
        %v295 = vld [vmem:[%s180 + $0xa8] sm:$0xff]
        %v296 = vld [vmem:[%s180 + $0xb0] sm:$0xff]
        %v297 = vld [vmem:[%s180 + $0xb8] sm:$0xff]
        %v298 = vld [vmem:[%s180 + $0xc0] sm:$0xff]
        %v299 = vld [vmem:[%s180 + $0xc8] sm:$0xff]
        %v300 = vld [vmem:[%s180 + $0xd0] sm:$0xff]
        %v301 = vld [vmem:[%s180 + $0xd8] sm:$0xff]
        %v302 = vld [vmem:[%s180 + $0xe0] sm:$0xff]
        %v303 = vld [vmem:[%s180 + $0xe8] sm:$0xff]
        %v304 = vld [vmem:[%s180 + $0xf0] sm:$0xff]
        %v305 = vld [vmem:[%s180 + $0xf8] sm:$0xff]
        %v306 = vld [vmem:[%s180 + $0x100] sm:$0xff]
        %v307 = vld [vmem:[%s180 + $0x108] sm:$0xff]
        %v308 = vld [vmem:[%s180 + $0x110] sm:$0xff]
        %v309 = vld [vmem:[%s180 + $0x118] sm:$0xff]
        %v310 = vld [vmem:[%s180 + $0x120] sm:$0xff]
        %v311 = vld [vmem:[%s180 + $0x128] sm:$0xff]
        %v312 = vld [vmem:[%s180 + $0x130] sm:$0xff]
        %v313 = vld [vmem:[%s180 + $0x138] sm:$0xff]
        %v314 = vld [vmem:[%s180 + $0x140] sm:$0xff]
        %v315 = vld [vmem:[%s180 + $0x148] sm:$0xff]
        %v316 = vld [vmem:[%s180 + $0x150] sm:$0xff]
        %v317 = vld [vmem:[%s180 + $0x158] sm:$0xff]
        %v318 = vld [vmem:[%s180 + $0x160] sm:$0xff]
        %v319 = vld [vmem:[%s180 + $0x168] sm:$0xff]
        %v320 = vld [vmem:[%s180 + $0x170] sm:$0xff]
        %v321 = vld [vmem:[%s180 + $0x178] sm:$0xff]
        %v322 = vld [vmem:[%s180 + $0x180] sm:$0xff]
        %v323 = vld [vmem:[%s180 + $0x188] sm:$0xff]
        %v324 = vld [vmem:[%s180 + $0x190] sm:$0xff]
        %v325 = vld [vmem:[%s180 + $0x198] sm:$0xff]
        %v326 = vld [vmem:[%s180 + $0x1a0] sm:$0xff]
        %v327 = vld [vmem:[%s180 + $0x1a8] sm:$0xff]
        %v328 = vld [vmem:[%s180 + $0x1b0] sm:$0xff]
        %v329 = vld [vmem:[%s180 + $0x1b8] sm:$0xff]
        %v330 = vld [vmem:[%s180 + $0x1c0] sm:$0xff]
        %v331 = vld [vmem:[%s180 + $0x1c8] sm:$0xff]
        %v332 = vld [vmem:[%s180 + $0x1d0] sm:$0xff]
        %v333 = vld [vmem:[%s180 + $0x1d8] sm:$0xff]
        %v334 = vld [vmem:[%s180 + $0x1e0] sm:$0xff]
        %v335 = vld [vmem:[%s180 + $0x1e8] sm:$0xff]
        %v336 = vld [vmem:[%s180 + $0x1f0] sm:$0xff]
        %v337 = vld [vmem:[%s180 + $0x1f8] sm:$0xff]
        %v338 = vsub.f32 %v210, %v274
        %v339 = vsub.f32 %v211, %v275
        %v340 = vsub.f32 %v212, %v276
        %v341 = vsub.f32 %v213, %v277
        %v342 = vsub.f32 %v214, %v278
        %v343 = vsub.f32 %v215, %v279
        %v344 = vsub.f32 %v216, %v280
        %v345 = vsub.f32 %v217, %v281
        %v346 = vsub.f32 %v218, %v282
        %v347 = vsub.f32 %v219, %v283
        %v348 = vsub.f32 %v220, %v284
        %v349 = vsub.f32 %v221, %v285
        %v350 = vsub.f32 %v222, %v286
        %v351 = vsub.f32 %v223, %v287
        %v352 = vsub.f32 %v224, %v288
        %v353 = vsub.f32 %v225, %v289
        %v354 = vsub.f32 %v226, %v290
        %v355 = vsub.f32 %v227, %v291
        %v356 = vsub.f32 %v228, %v292
        %v357 = vsub.f32 %v229, %v293
        %v358 = vsub.f32 %v230, %v294
        %v359 = vsub.f32 %v231, %v295
        %v360 = vsub.f32 %v232, %v296
        %v361 = vsub.f32 %v233, %v297
        %v362 = vsub.f32 %v234, %v298
        %v363 = vsub.f32 %v235, %v299
        %v364 = vsub.f32 %v236, %v300
        %v365 = vsub.f32 %v237, %v301
        %v366 = vsub.f32 %v238, %v302
        %v367 = vsub.f32 %v239, %v303
        %v368 = vsub.f32 %v240, %v304
        %v369 = vsub.f32 %v241, %v305
        %v370 = vsub.f32 %v242, %v306
        %v371 = vsub.f32 %v243, %v307
        %v372 = vsub.f32 %v244, %v308
        %v373 = vsub.f32 %v245, %v309
        %v374 = vsub.f32 %v246, %v310
        %v375 = vsub.f32 %v247, %v311
        %v376 = vsub.f32 %v248, %v312
        %v377 = vsub.f32 %v249, %v313
        %v378 = vsub.f32 %v250, %v314
        %v379 = vsub.f32 %v251, %v315
        %v380 = vsub.f32 %v252, %v316
        %v381 = vsub.f32 %v253, %v317
        %v382 = vsub.f32 %v254, %v318
        %v383 = vsub.f32 %v255, %v319
        %v384 = vsub.f32 %v256, %v320
        %v385 = vsub.f32 %v257, %v321
        %v386 = vsub.f32 %v258, %v322
        %v387 = vsub.f32 %v259, %v323
        %v388 = vsub.f32 %v260, %v324
        %v389 = vsub.f32 %v261, %v325
        %v390 = vsub.f32 %v262, %v326
        %v391 = vsub.f32 %v263, %v327
        %v392 = vsub.f32 %v264, %v328
        %v393 = vsub.f32 %v265, %v329
        %v394 = vsub.f32 %v266, %v330
        %v395 = vsub.f32 %v267, %v331
        %v396 = vsub.f32 %v268, %v332
        %v397 = vsub.f32 %v269, %v333
        %v398 = vsub.f32 %v270, %v334
        %v399 = vsub.f32 %v271, %v335
        %v400 = vsub.f32 %v272, %v336
        %v401 = vsub.f32 %v273, %v337
        %v402 = vstv %s209
        %v403 = vmul.f32 %v402, %v338
        %v404 = vmul.f32 %v402, %v339
        %v405 = vmul.f32 %v402, %v340
        %v406 = vmul.f32 %v402, %v341
        %v407 = vmul.f32 %v402, %v342
        %v408 = vmul.f32 %v402, %v343
        %v409 = vmul.f32 %v402, %v344
        %v410 = vmul.f32 %v402, %v345
        %v411 = vmul.f32 %v402, %v346
        %v412 = vmul.f32 %v402, %v347
        %v413 = vmul.f32 %v402, %v348
        %v414 = vmul.f32 %v402, %v349
        %v415 = vmul.f32 %v402, %v350
        %v416 = vmul.f32 %v402, %v351
        %v417 = vmul.f32 %v402, %v352
        %v418 = vmul.f32 %v402, %v353
        %v419 = vmul.f32 %v402, %v354
        %v420 = vmul.f32 %v402, %v355
        %v421 = vmul.f32 %v402, %v356
        %v422 = vmul.f32 %v402, %v357
        %v423 = vmul.f32 %v402, %v358
        %v424 = vmul.f32 %v402, %v359
        %v425 = vmul.f32 %v402, %v360
        %v426 = vmul.f32 %v402, %v361
        %v427 = vmul.f32 %v402, %v362
        %v428 = vmul.f32 %v402, %v363
        %v429 = vmul.f32 %v402, %v364
        %v430 = vmul.f32 %v402, %v365
        %v431 = vmul.f32 %v402, %v366
        %v432 = vmul.f32 %v402, %v367
        %v433 = vmul.f32 %v402, %v368
        %v434 = vmul.f32 %v402, %v369
        %v435 = vmul.f32 %v402, %v370
        %v436 = vmul.f32 %v402, %v371
        %v437 = vmul.f32 %v402, %v372
        %v438 = vmul.f32 %v402, %v373
        %v439 = vmul.f32 %v402, %v374
        %v440 = vmul.f32 %v402, %v375
        %v441 = vmul.f32 %v402, %v376
        %v442 = vmul.f32 %v402, %v377
        %v443 = vmul.f32 %v402, %v378
        %v444 = vmul.f32 %v402, %v379
        %v445 = vmul.f32 %v402, %v380
        %v446 = vmul.f32 %v402, %v381
        %v447 = vmul.f32 %v402, %v382
        %v448 = vmul.f32 %v402, %v383
        %v449 = vmul.f32 %v402, %v384
        %v450 = vmul.f32 %v402, %v385
        %v451 = vmul.f32 %v402, %v386
        %v452 = vmul.f32 %v402, %v387
        %v453 = vmul.f32 %v402, %v388
        %v454 = vmul.f32 %v402, %v389
        %v455 = vmul.f32 %v402, %v390
        %v456 = vmul.f32 %v402, %v391
        %v457 = vmul.f32 %v402, %v392
        %v458 = vmul.f32 %v402, %v393
        %v459 = vmul.f32 %v402, %v394
        %v460 = vmul.f32 %v402, %v395
        %v461 = vmul.f32 %v402, %v396
        %v462 = vmul.f32 %v402, %v397
        %v463 = vmul.f32 %v402, %v398
        %v464 = vmul.f32 %v402, %v399
        %v465 = vmul.f32 %v402, %v400
        %v466 = vmul.f32 %v402, %v401
        %v467 = vadd.f32 %v274, %v403
        %v468 = vadd.f32 %v275, %v404
        %v469 = vadd.f32 %v276, %v405
        %v470 = vadd.f32 %v277, %v406
        %v471 = vadd.f32 %v278, %v407
        %v472 = vadd.f32 %v279, %v408
        %v473 = vadd.f32 %v280, %v409
        %v474 = vadd.f32 %v281, %v410
        %v475 = vadd.f32 %v282, %v411
        %v476 = vadd.f32 %v283, %v412
        %v477 = vadd.f32 %v284, %v413
        %v478 = vadd.f32 %v285, %v414
        %v479 = vadd.f32 %v286, %v415
        %v480 = vadd.f32 %v287, %v416
        %v481 = vadd.f32 %v288, %v417
        %v482 = vadd.f32 %v289, %v418
        %v483 = vadd.f32 %v290, %v419
        %v484 = vadd.f32 %v291, %v420
        %v485 = vadd.f32 %v292, %v421
        %v486 = vadd.f32 %v293, %v422
        %v487 = vadd.f32 %v294, %v423
        %v488 = vadd.f32 %v295, %v424
        %v489 = vadd.f32 %v296, %v425
        %v490 = vadd.f32 %v297, %v426
        %v491 = vadd.f32 %v298, %v427
        %v492 = vadd.f32 %v299, %v428
        %v493 = vadd.f32 %v300, %v429
        %v494 = vadd.f32 %v301, %v430
        %v495 = vadd.f32 %v302, %v431
        %v496 = vadd.f32 %v303, %v432
        %v497 = vadd.f32 %v304, %v433
        %v498 = vadd.f32 %v305, %v434
        %v499 = vadd.f32 %v306, %v435
        %v500 = vadd.f32 %v307, %v436
        %v501 = vadd.f32 %v308, %v437
        %v502 = vadd.f32 %v309, %v438
        %v503 = vadd.f32 %v310, %v439
        %v504 = vadd.f32 %v311, %v440
        %v505 = vadd.f32 %v312, %v441
        %v506 = vadd.f32 %v313, %v442
        %v507 = vadd.f32 %v314, %v443
        %v508 = vadd.f32 %v315, %v444
        %v509 = vadd.f32 %v316, %v445
        %v510 = vadd.f32 %v317, %v446
        %v511 = vadd.f32 %v318, %v447
        %v512 = vadd.f32 %v319, %v448
        %v513 = vadd.f32 %v320, %v449
        %v514 = vadd.f32 %v321, %v450
        %v515 = vadd.f32 %v322, %v451
        %v516 = vadd.f32 %v323, %v452
        %v517 = vadd.f32 %v324, %v453
        %v518 = vadd.f32 %v325, %v454
        %v519 = vadd.f32 %v326, %v455
        %v520 = vadd.f32 %v327, %v456
        %v521 = vadd.f32 %v328, %v457
        %v522 = vadd.f32 %v329, %v458
        %v523 = vadd.f32 %v330, %v459
        %v524 = vadd.f32 %v331, %v460
        %v525 = vadd.f32 %v332, %v461
        %v526 = vadd.f32 %v333, %v462
        %v527 = vadd.f32 %v334, %v463
        %v528 = vadd.f32 %v335, %v464
        %v529 = vadd.f32 %v336, %v465
        %v530 = vadd.f32 %v337, %v466
        %531 = vst [vmem:[%s205] sm:$0xff] %v467
        %532 = vst [vmem:[%s205 + $0x8] sm:$0xff] %v468
        %533 = vst [vmem:[%s205 + $0x10] sm:$0xff] %v469
        %534 = vst [vmem:[%s205 + $0x18] sm:$0xff] %v470
        %535 = vst [vmem:[%s205 + $0x20] sm:$0xff] %v471
        %536 = vst [vmem:[%s205 + $0x28] sm:$0xff] %v472
        %537 = vst [vmem:[%s205 + $0x30] sm:$0xff] %v473
        %538 = vst [vmem:[%s205 + $0x38] sm:$0xff] %v474
        %539 = vst [vmem:[%s205 + $0x40] sm:$0xff] %v475
        %540 = vst [vmem:[%s205 + $0x48] sm:$0xff] %v476
        %541 = vst [vmem:[%s205 + $0x50] sm:$0xff] %v477
        %542 = vst [vmem:[%s205 + $0x58] sm:$0xff] %v478
        %543 = vst [vmem:[%s205 + $0x60] sm:$0xff] %v479
        %544 = vst [vmem:[%s205 + $0x68] sm:$0xff] %v480
        %545 = vst [vmem:[%s205 + $0x70] sm:$0xff] %v481
        %546 = vst [vmem:[%s205 + $0x78] sm:$0xff] %v482
        %547 = vst [vmem:[%s205 + $0x80] sm:$0xff] %v483
        %548 = vst [vmem:[%s205 + $0x88] sm:$0xff] %v484
        %549 = vst [vmem:[%s205 + $0x90] sm:$0xff] %v485
        %550 = vst [vmem:[%s205 + $0x98] sm:$0xff] %v486
        %551 = vst [vmem:[%s205 + $0xa0] sm:$0xff] %v487
        %552 = vst [vmem:[%s205 + $0xa8] sm:$0xff] %v488
        %553 = vst [vmem:[%s205 + $0xb0] sm:$0xff] %v489
        %554 = vst [vmem:[%s205 + $0xb8] sm:$0xff] %v490
        %555 = vst [vmem:[%s205 + $0xc0] sm:$0xff] %v491
        %556 = vst [vmem:[%s205 + $0xc8] sm:$0xff] %v492
        %557 = vst [vmem:[%s205 + $0xd0] sm:$0xff] %v493
        %558 = vst [vmem:[%s205 + $0xd8] sm:$0xff] %v494
        %559 = vst [vmem:[%s205 + $0xe0] sm:$0xff] %v495
        %560 = vst [vmem:[%s205 + $0xe8] sm:$0xff] %v496
        %561 = vst [vmem:[%s205 + $0xf0] sm:$0xff] %v497
        %562 = vst [vmem:[%s205 + $0xf8] sm:$0xff] %v498
        %563 = vst [vmem:[%s205 + $0x100] sm:$0xff] %v499
        %564 = vst [vmem:[%s205 + $0x108] sm:$0xff] %v500
        %565 = vst [vmem:[%s205 + $0x110] sm:$0xff] %v501
        %566 = vst [vmem:[%s205 + $0x118] sm:$0xff] %v502
        %567 = vst [vmem:[%s205 + $0x120] sm:$0xff] %v503
        %568 = vst [vmem:[%s205 + $0x128] sm:$0xff] %v504
        %569 = vst [vmem:[%s205 + $0x130] sm:$0xff] %v505
        %570 = vst [vmem:[%s205 + $0x138] sm:$0xff] %v506
        %571 = vst [vmem:[%s205 + $0x140] sm:$0xff] %v507
        %572 = vst [vmem:[%s205 + $0x148] sm:$0xff] %v508
        %573 = vst [vmem:[%s205 + $0x150] sm:$0xff] %v509
        %574 = vst [vmem:[%s205 + $0x158] sm:$0xff] %v510
        %575 = vst [vmem:[%s205 + $0x160] sm:$0xff] %v511
        %576 = vst [vmem:[%s205 + $0x168] sm:$0xff] %v512
        %577 = vst [vmem:[%s205 + $0x170] sm:$0xff] %v513
        %578 = vst [vmem:[%s205 + $0x178] sm:$0xff] %v514
        %579 = vst [vmem:[%s205 + $0x180] sm:$0xff] %v515
        %580 = vst [vmem:[%s205 + $0x188] sm:$0xff] %v516
        %581 = vst [vmem:[%s205 + $0x190] sm:$0xff] %v517
        %582 = vst [vmem:[%s205 + $0x198] sm:$0xff] %v518
        %583 = vst [vmem:[%s205 + $0x1a0] sm:$0xff] %v519
        %584 = vst [vmem:[%s205 + $0x1a8] sm:$0xff] %v520
        %585 = vst [vmem:[%s205 + $0x1b0] sm:$0xff] %v521
        %586 = vst [vmem:[%s205 + $0x1b8] sm:$0xff] %v522
        %587 = vst [vmem:[%s205 + $0x1c0] sm:$0xff] %v523
        %588 = vst [vmem:[%s205 + $0x1c8] sm:$0xff] %v524
        %589 = vst [vmem:[%s205 + $0x1d0] sm:$0xff] %v525
        %590 = vst [vmem:[%s205 + $0x1d8] sm:$0xff] %v526
        %591 = vst [vmem:[%s205 + $0x1e0] sm:$0xff] %v527
        %592 = vst [vmem:[%s205 + $0x1e8] sm:$0xff] %v528
        %593 = vst [vmem:[%s205 + $0x1f0] sm:$0xff] %v529
        %594 = vst [vmem:[%s205 + $0x1f8] sm:$0xff] %v530
        %s595 = sand.u32 %s84, 1
        %s596 = scalar_lea.sflag [#allocation6], %s595
        %s597 = sand.u32 %s84, 1
        %s598 = smul.addr %s597, 512
        %s599 = scalar_lea.vmem [#allocation9], %s598
        // Predicated region
        $region37: #{tpu_custom_call.1} parent=27 // pred_check
          %p600 = pneg %p94
        $region38: #{tpu_custom_call.1} parent=27 // pred_check_branch
          %602 = sbr.rel (%p600) target = $region40
        $region39: #{tpu_custom_call.1} parent=27 // pred_region
          %s603 = smul.u32 8, %s24
          %s605 = ssub.s32 8192, 8192
          %606 = vsyncadd %s596, %s605
          %s607 = smul.addr %s603, 8
          %s608 = smul.addr %s607, 128
          %s609 = scalar_lea.hbm %s3, %s608
          %s610 = sshll.u32 %s599, 4
          %s611 = int_to_ptr.vmem [resolvable:$true] %s610
          %616 = dma.vmem_to_hbm [thread:$0]  %s611, 8192, %s609, %s596, 1024, 1024, 64
        $region40: #{tpu_custom_call.1} parent=27 // pred_fallthru
          _
      $region28: #{tpu_custom_call.1} parent=5 // pred_fallthru
        _
      %p617 = scmp.le.s32.totalorder 2, %s19
      // Predicated region
      $region41: #{tpu_custom_call.1} parent=5 // pred_check
        %p618 = pneg %p617
      $region42: #{tpu_custom_call.1} parent=5 // pred_check_branch
        %620 = sbr.rel (%p618) target = $region44
      $region43: #{tpu_custom_call.1} parent=5 // pred_region
        %s621 = ssub.s32 %s19, 2
        // Predicated region
        $region45: #{tpu_custom_call.1} parent=43 // pred_check
          %p622 = pneg %p100
        $region46: #{tpu_custom_call.1} parent=43 // pred_check_branch
          %624 = sbr.rel (%p622) target = $region48
        $region47: #{tpu_custom_call.1} parent=43 // pred_region
          %s625 = sand.u32 %s85, 1
          %s626 = scalar_lea.sflag [#allocation6], %s625
          %s627 = sand.u32 %s85, 1
          %s628 = smul.addr %s627, 512
          %s629 = scalar_lea.vmem [#allocation9], %s628
          %630 = dma.done %s626, 8192
        $region48: #{tpu_custom_call.1} parent=43 // pred_fallthru
          _
      $region44: #{tpu_custom_call.1} parent=5 // pred_fallthru
        _
    $region6: #{tpu_custom_call.1} parent=1 // loop_footer
      %s23 = sadd.s32 1, %s19
    $region7: #{tpu_custom_call.1} parent=1 // loop_footer_branch
      %18 = sbr.rel target = $region3
    $region8: #{tpu_custom_call.1} parent=1 // loop_exit
      _
    %631 = vsyncpa [#allocation5], 1
    %s632 = scalar_lea.sflag [#allocation5], 1
    %633 = vsyncpa %s632, 1
    %634 = vsyncpa [#allocation8], 1
    %s635 = scalar_lea.sflag [#allocation8], 1
    %636 = vsyncpa %s635, 1
    %637 = vsyncpa [#allocation6], 1
    %s638 = scalar_lea.sflag [#allocation6], 1
    %639 = vsyncpa %s638, 1

</llo_original>
